<compile_context>
chip_gen: v6e
topology: v6e:2x2x1
jax: 0.10.0
libtpu: 0.0.40
codegen_flags: <defaults>
</compile_context>

<pallas_src>
import jax
import jax.numpy as jnp
from jax.experimental import pallas as pl
from jax.experimental.pallas import tpu as pltpu


# ----------------------------- Pallas kernel ------------------------------

def _make_fused_kernel(B, T, K):
    def kernel(y_ref, x_ref, wconv_ref, bconv_ref, wih_ref, whh_ref, bias_ref,
               wfc_ref, bfc_ref, out_ref, hall_ref):
        f32 = jnp.float32
        bf16 = jnp.bfloat16

        # 1) causal im2col fully in-kernel (channel 0 = y, channel 1 = x,
        #    matching torch.cat((y, x), dim=1)).  K static lane slices per
        #    channel; time-major (T*B) rows from the sublane concat order.
        zpad = jnp.zeros((B, K - 1), f32)
        y_pad = jnp.concatenate([zpad, y_ref[...]], axis=1)          # (B, T+K-1)
        x_pad = jnp.concatenate([zpad, x_ref[...]], axis=1)          # (B, T+K-1)
        a_y = jnp.concatenate([y_pad[:, t:t + K] for t in range(T)], axis=0)
        a_x = jnp.concatenate([x_pad[:, t:t + K] for t in range(T)], axis=0)
        patches = jnp.concatenate([a_y, a_x], axis=1)                # (T*B, C*K)

        # 2) context embedding: tanh(patches @ Wconv + b_conv) -> (T*B, E)
        #    bf16 MXU operands, f32 accumulate, f32 elementwise (v5e-safe).
        emb = jnp.tanh(
            jnp.dot(patches.astype(bf16), wconv_ref[...],
                    preferred_element_type=f32) + bconv_ref[...])

        # 3) hoisted input projection (bias = b_ih + b_hh pre-folded) -> (T*B, H)
        xproj = (jnp.dot(emb.astype(bf16), wih_ref[...],
                         preferred_element_type=f32) + bias_ref[...])

        # 4) recurrence: only h @ Whh is on the serial dependency chain.
        #    Whh load hoisted out of the loop; carry h stays f32.
        H = whh_ref.shape[0]
        whh = whh_ref[...]                                           # (H, H) bf16
        # TODO(synk): weight-stationary MXU (matmul_push_rhs/acc_lhs/pop) +
        #   lax.fori_loop once T grows beyond a few dozen steps.
        h = jnp.zeros((B, H), dtype=f32)
        for t in range(T):                        # T static -> unrolled (small T)
            x_t = xproj[t * B:(t + 1) * B, :]
            h = jnp.tanh(x_t + jnp.dot(h.astype(bf16), whh,
                                       preferred_element_type=f32))
            hall_ref[t * B:(t + 1) * B, :] = h    # plain store, bounds live ranges

        # 5) FC head on VPU/XLU: broadcast multiply + lane reduction, one
        #    dense store (frees the MXU; no (T*B,H)@(H,1) degenerate pass).
        out_ref[...] = (jnp.sum(hall_ref[...] * wfc_ref[...], axis=-1,
                                keepdims=True) + bfc_ref[...])       # (T*B, 1)
    return kernel


# ------------------------------- wrapper ----------------------------------

def rnn_series_forward(x, y, params):
    """x, y: (B, T) -> (B, T, 1)."""
    B, T = x.shape
    E, C, K = params["w_conv"].shape
    H = params["w_hh"].shape[0]

    # Weight prep only (tiny, one-time); activations go into the kernel raw.
    w_conv_mat = params["w_conv"].reshape(E, C * K).T.astype(jnp.bfloat16)  # (C*K, E)
    b_conv = params["b_conv"].reshape(1, E)                                 # f32
    w_ih_t = params["w_ih"].T.astype(jnp.bfloat16)                          # (E, H)
    w_hh_t = params["w_hh"].T.astype(jnp.bfloat16)                          # (H, H)
    bias = (params["b_ih"] + params["b_hh"]).reshape(1, H)                  # f32
    w_fc_row = params["w_fc"].reshape(1, H)                                 # f32 (VPU)
    b_fc = params["b_fc"].reshape(1, 1)                                     # f32

    vmem = pl.BlockSpec(memory_space=pltpu.MemorySpace.VMEM)
    out = pl.pallas_call(
        _make_fused_kernel(B, T, K),
        out_shape=jax.ShapeDtypeStruct((T * B, 1), jnp.float32),
        in_specs=[vmem] * 9,
        out_specs=vmem,
        scratch_shapes=[pltpu.VMEM((T * B, H), jnp.float32)],
    )(y, x, w_conv_mat, b_conv, w_ih_t, w_hh_t, bias, w_fc_row, b_fc)

    # time-major (T, B, 1) -> batch-first (B, T, 1)
    return jnp.transpose(out.reshape(T, B, 1), (1, 0, 2))


# --------------------------- pure-JAX reference ----------------------------

def rnn_series_reference(x, y, params):
    z = jnp.stack([y, x], axis=1)                              # (B, 2, T)
    B, C, T = z.shape
    E, _, K = params["w_conv"].shape
    zp = jnp.pad(z, ((0, 0), (0, 0), (K - 1, 0)))
    idx = jnp.arange(T)[:, None] + jnp.arange(K)[None, :]
    conv = jnp.einsum("eck,bctk->bet", params["w_conv"], zp[:, :, idx])
    emb = jnp.tanh(conv + params["b_conv"][None, :, None])     # (B, E, T)
    emb = jnp.transpose(emb, (0, 2, 1))                        # (B, T, E)
    H = params["w_hh"].shape[0]
    h = jnp.zeros((B, H), dtype=jnp.float32)
    outs = []
    for t in range(T):
        h = jnp.tanh(emb[:, t, :] @ params["w_ih"].T + params["b_ih"]
                     + h @ params["w_hh"].T + params["b_hh"])
        outs.append(h @ params["w_fc"].T + params["b_fc"])
    return jnp.stack(outs, axis=1)                             # (B, T, 1)


# --------------------------------- main ------------------------------------

if __name__ == "__main__":
    # Small, forward-consistent sizes: input_size=2 (fixed by forward),
    # embedding_size=32, kernel_width=4, hidden_size=32, batch=2, seq=8.
    B, T = 2, 8
    C, E, K, H = 2, 32, 4, 32

    key = jax.random.PRNGKey(0)
    ks = jax.random.split(key, 10)

    def u(k, shape, fan_in):
        bound = 1.0 / jnp.sqrt(fan_in)
        return jax.random.uniform(k, shape, jnp.float32, -bound, bound)

    params = {
        "w_conv": u(ks[0], (E, C, K), C * K),
        "b_conv": u(ks[1], (E,), C * K),
        "w_ih":   u(ks[2], (H, E), H),
        "w_hh":   u(ks[3], (H, H), H),
        "b_ih":   u(ks[4], (H,), H),
        "b_hh":   u(ks[5], (H,), H),
        "w_fc":   u(ks[6], (1, H), H),
        "b_fc":   u(ks[7], (1,), H),
    }

    x = jax.random.normal(ks[8], (B, T), jnp.float32)   # time covariate
    y = jax.random.normal(ks[9], (B, T), jnp.float32)   # observed target

    fwd = jax.jit(rnn_series_forward)
    out = fwd(x, y, params)
    out = jax.block_until_ready(out)

    ref = rnn_series_reference(x, y, params)
    assert out.shape == (B, T, 1)
    # bf16 MXU operands (f32 accumulate/carry) vs f32 reference -> loosened tol.
    assert jnp.allclose(out, ref, rtol=3e-2, atol=3e-2), "mismatch vs reference"

    print("KERNEL_OK")
</pallas_src>

<mosaic_0001>
module attributes {stable_mosaic.version = 11 : i64} {
  func.func @kernel(%arg0: memref<2x8xf32, #tpu.memory_space<vmem>>, %arg1: memref<2x8xf32, #tpu.memory_space<vmem>>, %arg2: memref<8x32xbf16, #tpu.memory_space<vmem>>, %arg3: memref<1x32xf32, #tpu.memory_space<vmem>>, %arg4: memref<32x32xbf16, #tpu.memory_space<vmem>>, %arg5: memref<32x32xbf16, #tpu.memory_space<vmem>>, %arg6: memref<1x32xf32, #tpu.memory_space<vmem>>, %arg7: memref<1x32xf32, #tpu.memory_space<vmem>>, %arg8: memref<1x1xf32, #tpu.memory_space<vmem>>, %arg9: memref<16x1xf32, #tpu.memory_space<vmem>>, %arg10: memref<16x32xf32, #tpu.memory_space<vmem>>) attributes {dimension_semantics = [], scalar_prefetch = 0 : i64, scratch_operands = 1 : i64, tpu.core_type = #tpu.core_type<tc>} {
    %cst = arith.constant 0.000000e+00 : f32
    %0 = vector.broadcast %cst : f32 to vector<2x3xf32>
    %c0 = arith.constant 0 : index
    %c0_0 = arith.constant 0 : index
    %1 = vector.load %arg0[%c0, %c0_0] : memref<2x8xf32, #tpu.memory_space<vmem>>, vector<2x8xf32>
    %2 = tpu.concatenate %0, %1 in 1 : vector<2x3xf32>, vector<2x8xf32> -> vector<2x11xf32>
    %c0_1 = arith.constant 0 : index
    %c0_2 = arith.constant 0 : index
    %3 = vector.load %arg1[%c0_1, %c0_2] : memref<2x8xf32, #tpu.memory_space<vmem>>, vector<2x8xf32>
    %4 = tpu.concatenate %0, %3 in 1 : vector<2x3xf32>, vector<2x8xf32> -> vector<2x11xf32>
    %5 = vector.extract_strided_slice %2 {offsets = [0, 0], sizes = [2, 4], strides = [1, 1]} : vector<2x11xf32> to vector<2x4xf32>
    %6 = vector.extract_strided_slice %2 {offsets = [0, 1], sizes = [2, 4], strides = [1, 1]} : vector<2x11xf32> to vector<2x4xf32>
    %7 = vector.extract_strided_slice %2 {offsets = [0, 2], sizes = [2, 4], strides = [1, 1]} : vector<2x11xf32> to vector<2x4xf32>
    %8 = vector.extract_strided_slice %2 {offsets = [0, 3], sizes = [2, 4], strides = [1, 1]} : vector<2x11xf32> to vector<2x4xf32>
    %9 = vector.extract_strided_slice %2 {offsets = [0, 4], sizes = [2, 4], strides = [1, 1]} : vector<2x11xf32> to vector<2x4xf32>
    %10 = vector.extract_strided_slice %2 {offsets = [0, 5], sizes = [2, 4], strides = [1, 1]} : vector<2x11xf32> to vector<2x4xf32>
    %11 = vector.extract_strided_slice %2 {offsets = [0, 6], sizes = [2, 4], strides = [1, 1]} : vector<2x11xf32> to vector<2x4xf32>
    %12 = vector.extract_strided_slice %2 {offsets = [0, 7], sizes = [2, 4], strides = [1, 1]} : vector<2x11xf32> to vector<2x4xf32>
    %13 = tpu.concatenate %5, %6, %7, %8, %9, %10, %11, %12 in 0 : vector<2x4xf32>, vector<2x4xf32>, vector<2x4xf32>, vector<2x4xf32>, vector<2x4xf32>, vector<2x4xf32>, vector<2x4xf32>, vector<2x4xf32> -> vector<16x4xf32>
    %14 = vector.extract_strided_slice %4 {offsets = [0, 0], sizes = [2, 4], strides = [1, 1]} : vector<2x11xf32> to vector<2x4xf32>
    %15 = vector.extract_strided_slice %4 {offsets = [0, 1], sizes = [2, 4], strides = [1, 1]} : vector<2x11xf32> to vector<2x4xf32>
    %16 = vector.extract_strided_slice %4 {offsets = [0, 2], sizes = [2, 4], strides = [1, 1]} : vector<2x11xf32> to vector<2x4xf32>
    %17 = vector.extract_strided_slice %4 {offsets = [0, 3], sizes = [2, 4], strides = [1, 1]} : vector<2x11xf32> to vector<2x4xf32>
    %18 = vector.extract_strided_slice %4 {offsets = [0, 4], sizes = [2, 4], strides = [1, 1]} : vector<2x11xf32> to vector<2x4xf32>
    %19 = vector.extract_strided_slice %4 {offsets = [0, 5], sizes = [2, 4], strides = [1, 1]} : vector<2x11xf32> to vector<2x4xf32>
    %20 = vector.extract_strided_slice %4 {offsets = [0, 6], sizes = [2, 4], strides = [1, 1]} : vector<2x11xf32> to vector<2x4xf32>
    %21 = vector.extract_strided_slice %4 {offsets = [0, 7], sizes = [2, 4], strides = [1, 1]} : vector<2x11xf32> to vector<2x4xf32>
    %22 = tpu.concatenate %14, %15, %16, %17, %18, %19, %20, %21 in 0 : vector<2x4xf32>, vector<2x4xf32>, vector<2x4xf32>, vector<2x4xf32>, vector<2x4xf32>, vector<2x4xf32>, vector<2x4xf32>, vector<2x4xf32> -> vector<16x4xf32>
    %23 = tpu.concatenate %13, %22 in 1 : vector<16x4xf32>, vector<16x4xf32> -> vector<16x8xf32>
    %24 = arith.truncf %23 : vector<16x8xf32> to vector<16x8xbf16>
    %c0_3 = arith.constant 0 : index
    %c0_4 = arith.constant 0 : index
    %25 = vector.load %arg2[%c0_3, %c0_4] : memref<8x32xbf16, #tpu.memory_space<vmem>>, vector<8x32xbf16>
    %cst_5 = arith.constant dense<0.000000e+00> : vector<16x32xf32>
    %26 = tpu.matmul %24, %25, %cst_5 {dimension_numbers = #tpu.dot_dimension_numbers<[1], [0], [0], [1], [0, 0, 1, 1], [], []>} : vector<16x8xbf16>, vector<8x32xbf16>, vector<16x32xf32> -> vector<16x32xf32>
    %c0_6 = arith.constant 0 : index
    %c0_7 = arith.constant 0 : index
    %27 = vector.load %arg3[%c0_6, %c0_7] : memref<1x32xf32, #tpu.memory_space<vmem>>, vector<1x32xf32>
    %28 = vector.broadcast %27 : vector<1x32xf32> to vector<16x32xf32>
    %29 = arith.addf %26, %28 : vector<16x32xf32>
    %30 = math.tanh %29 : vector<16x32xf32>
    %31 = arith.truncf %30 : vector<16x32xf32> to vector<16x32xbf16>
    %c0_8 = arith.constant 0 : index
    %c0_9 = arith.constant 0 : index
    %32 = vector.load %arg4[%c0_8, %c0_9] : memref<32x32xbf16, #tpu.memory_space<vmem>>, vector<32x32xbf16>
    %cst_10 = arith.constant dense<0.000000e+00> : vector<16x32xf32>
    %33 = tpu.matmul %31, %32, %cst_10 {dimension_numbers = #tpu.dot_dimension_numbers<[1], [0], [0], [1], [0, 0, 1, 1], [], []>} : vector<16x32xbf16>, vector<32x32xbf16>, vector<16x32xf32> -> vector<16x32xf32>
    %c0_11 = arith.constant 0 : index
    %c0_12 = arith.constant 0 : index
    %34 = vector.load %arg6[%c0_11, %c0_12] : memref<1x32xf32, #tpu.memory_space<vmem>>, vector<1x32xf32>
    %35 = vector.broadcast %34 : vector<1x32xf32> to vector<16x32xf32>
    %36 = arith.addf %33, %35 : vector<16x32xf32>
    %c0_13 = arith.constant 0 : index
    %c0_14 = arith.constant 0 : index
    %37 = vector.load %arg5[%c0_13, %c0_14] : memref<32x32xbf16, #tpu.memory_space<vmem>>, vector<32x32xbf16>
    %cst_15 = arith.constant 0.000000e+00 : f32
    %38 = vector.broadcast %cst_15 : f32 to vector<2x32xf32>
    %39 = vector.extract_strided_slice %36 {offsets = [0, 0], sizes = [2, 32], strides = [1, 1]} : vector<16x32xf32> to vector<2x32xf32>
    %40 = arith.truncf %38 : vector<2x32xf32> to vector<2x32xbf16>
    %cst_16 = arith.constant dense<0.000000e+00> : vector<2x32xf32>
    %41 = tpu.matmul %40, %37, %cst_16 {dimension_numbers = #tpu.dot_dimension_numbers<[1], [0], [0], [1], [0, 0, 1, 1], [], []>} : vector<2x32xbf16>, vector<32x32xbf16>, vector<2x32xf32> -> vector<2x32xf32>
    %42 = arith.addf %39, %41 : vector<2x32xf32>
    %43 = math.tanh %42 : vector<2x32xf32>
    %c0_17 = arith.constant 0 : index
    %c0_18 = arith.constant 0 : index
    %44 = vector.load %arg10[%c0_17, %c0_18] : memref<16x32xf32, #tpu.memory_space<vmem>>, vector<2x32xf32>
    tpu.vector_store %arg10[%c0_17, %c0_18], %43 {strides = array<i32>} : memref<16x32xf32, #tpu.memory_space<vmem>>, vector<2x32xf32>,
    %45 = vector.extract_strided_slice %36 {offsets = [2, 0], sizes = [2, 32], strides = [1, 1]} : vector<16x32xf32> to vector<2x32xf32>
    %46 = arith.truncf %43 : vector<2x32xf32> to vector<2x32xbf16>
    %cst_19 = arith.constant dense<0.000000e+00> : vector<2x32xf32>
    %47 = tpu.matmul %46, %37, %cst_19 {dimension_numbers = #tpu.dot_dimension_numbers<[1], [0], [0], [1], [0, 0, 1, 1], [], []>} : vector<2x32xbf16>, vector<32x32xbf16>, vector<2x32xf32> -> vector<2x32xf32>
    %48 = arith.addf %45, %47 : vector<2x32xf32>
    %49 = math.tanh %48 : vector<2x32xf32>
    %c2 = arith.constant 2 : index
    %c0_20 = arith.constant 0 : index
    %50 = vector.load %arg10[%c2, %c0_20] : memref<16x32xf32, #tpu.memory_space<vmem>>, vector<2x32xf32>
    tpu.vector_store %arg10[%c2, %c0_20], %49 {strides = array<i32>} : memref<16x32xf32, #tpu.memory_space<vmem>>, vector<2x32xf32>,
    %51 = vector.extract_strided_slice %36 {offsets = [4, 0], sizes = [2, 32], strides = [1, 1]} : vector<16x32xf32> to vector<2x32xf32>
    %52 = arith.truncf %49 : vector<2x32xf32> to vector<2x32xbf16>
    %cst_21 = arith.constant dense<0.000000e+00> : vector<2x32xf32>
    %53 = tpu.matmul %52, %37, %cst_21 {dimension_numbers = #tpu.dot_dimension_numbers<[1], [0], [0], [1], [0, 0, 1, 1], [], []>} : vector<2x32xbf16>, vector<32x32xbf16>, vector<2x32xf32> -> vector<2x32xf32>
    %54 = arith.addf %51, %53 : vector<2x32xf32>
    %55 = math.tanh %54 : vector<2x32xf32>
    %c4 = arith.constant 4 : index
    %c0_22 = arith.constant 0 : index
    %56 = vector.load %arg10[%c4, %c0_22] : memref<16x32xf32, #tpu.memory_space<vmem>>, vector<2x32xf32>
    tpu.vector_store %arg10[%c4, %c0_22], %55 {strides = array<i32>} : memref<16x32xf32, #tpu.memory_space<vmem>>, vector<2x32xf32>,
    %57 = vector.extract_strided_slice %36 {offsets = [6, 0], sizes = [2, 32], strides = [1, 1]} : vector<16x32xf32> to vector<2x32xf32>
    %58 = arith.truncf %55 : vector<2x32xf32> to vector<2x32xbf16>
    %cst_23 = arith.constant dense<0.000000e+00> : vector<2x32xf32>
    %59 = tpu.matmul %58, %37, %cst_23 {dimension_numbers = #tpu.dot_dimension_numbers<[1], [0], [0], [1], [0, 0, 1, 1], [], []>} : vector<2x32xbf16>, vector<32x32xbf16>, vector<2x32xf32> -> vector<2x32xf32>
    %60 = arith.addf %57, %59 : vector<2x32xf32>
    %61 = math.tanh %60 : vector<2x32xf32>
    %c6 = arith.constant 6 : index
    %c0_24 = arith.constant 0 : index
    %62 = vector.load %arg10[%c6, %c0_24] : memref<16x32xf32, #tpu.memory_space<vmem>>, vector<2x32xf32>
    tpu.vector_store %arg10[%c6, %c0_24], %61 {strides = array<i32>} : memref<16x32xf32, #tpu.memory_space<vmem>>, vector<2x32xf32>,
    %63 = vector.extract_strided_slice %36 {offsets = [8, 0], sizes = [2, 32], strides = [1, 1]} : vector<16x32xf32> to vector<2x32xf32>
    %64 = arith.truncf %61 : vector<2x32xf32> to vector<2x32xbf16>
    %cst_25 = arith.constant dense<0.000000e+00> : vector<2x32xf32>
    %65 = tpu.matmul %64, %37, %cst_25 {dimension_numbers = #tpu.dot_dimension_numbers<[1], [0], [0], [1], [0, 0, 1, 1], [], []>} : vector<2x32xbf16>, vector<32x32xbf16>, vector<2x32xf32> -> vector<2x32xf32>
    %66 = arith.addf %63, %65 : vector<2x32xf32>
    %67 = math.tanh %66 : vector<2x32xf32>
    %c8 = arith.constant 8 : index
    %c0_26 = arith.constant 0 : index
    %68 = vector.load %arg10[%c8, %c0_26] : memref<16x32xf32, #tpu.memory_space<vmem>>, vector<2x32xf32>
    tpu.vector_store %arg10[%c8, %c0_26], %67 {strides = array<i32>} : memref<16x32xf32, #tpu.memory_space<vmem>>, vector<2x32xf32>,
    %69 = vector.extract_strided_slice %36 {offsets = [10, 0], sizes = [2, 32], strides = [1, 1]} : vector<16x32xf32> to vector<2x32xf32>
    %70 = arith.truncf %67 : vector<2x32xf32> to vector<2x32xbf16>
    %cst_27 = arith.constant dense<0.000000e+00> : vector<2x32xf32>
    %71 = tpu.matmul %70, %37, %cst_27 {dimension_numbers = #tpu.dot_dimension_numbers<[1], [0], [0], [1], [0, 0, 1, 1], [], []>} : vector<2x32xbf16>, vector<32x32xbf16>, vector<2x32xf32> -> vector<2x32xf32>
    %72 = arith.addf %69, %71 : vector<2x32xf32>
    %73 = math.tanh %72 : vector<2x32xf32>
    %c10 = arith.constant 10 : index
    %c0_28 = arith.constant 0 : index
    %74 = vector.load %arg10[%c10, %c0_28] : memref<16x32xf32, #tpu.memory_space<vmem>>, vector<2x32xf32>
    tpu.vector_store %arg10[%c10, %c0_28], %73 {strides = array<i32>} : memref<16x32xf32, #tpu.memory_space<vmem>>, vector<2x32xf32>,
    %75 = vector.extract_strided_slice %36 {offsets = [12, 0], sizes = [2, 32], strides = [1, 1]} : vector<16x32xf32> to vector<2x32xf32>
    %76 = arith.truncf %73 : vector<2x32xf32> to vector<2x32xbf16>
    %cst_29 = arith.constant dense<0.000000e+00> : vector<2x32xf32>
    %77 = tpu.matmul %76, %37, %cst_29 {dimension_numbers = #tpu.dot_dimension_numbers<[1], [0], [0], [1], [0, 0, 1, 1], [], []>} : vector<2x32xbf16>, vector<32x32xbf16>, vector<2x32xf32> -> vector<2x32xf32>
    %78 = arith.addf %75, %77 : vector<2x32xf32>
    %79 = math.tanh %78 : vector<2x32xf32>
    %c12 = arith.constant 12 : index
    %c0_30 = arith.constant 0 : index
    %80 = vector.load %arg10[%c12, %c0_30] : memref<16x32xf32, #tpu.memory_space<vmem>>, vector<2x32xf32>
    tpu.vector_store %arg10[%c12, %c0_30], %79 {strides = array<i32>} : memref<16x32xf32, #tpu.memory_space<vmem>>, vector<2x32xf32>,
    %81 = vector.extract_strided_slice %36 {offsets = [14, 0], sizes = [2, 32], strides = [1, 1]} : vector<16x32xf32> to vector<2x32xf32>
    %82 = arith.truncf %79 : vector<2x32xf32> to vector<2x32xbf16>
    %cst_31 = arith.constant dense<0.000000e+00> : vector<2x32xf32>
    %83 = tpu.matmul %82, %37, %cst_31 {dimension_numbers = #tpu.dot_dimension_numbers<[1], [0], [0], [1], [0, 0, 1, 1], [], []>} : vector<2x32xbf16>, vector<32x32xbf16>, vector<2x32xf32> -> vector<2x32xf32>
    %84 = arith.addf %81, %83 : vector<2x32xf32>
    %85 = math.tanh %84 : vector<2x32xf32>
    %c14 = arith.constant 14 : index
    %c0_32 = arith.constant 0 : index
    %86 = vector.load %arg10[%c14, %c0_32] : memref<16x32xf32, #tpu.memory_space<vmem>>, vector<2x32xf32>
    tpu.vector_store %arg10[%c14, %c0_32], %85 {strides = array<i32>} : memref<16x32xf32, #tpu.memory_space<vmem>>, vector<2x32xf32>,
    %c0_33 = arith.constant 0 : index
    %c0_34 = arith.constant 0 : index
    %87 = vector.load %arg10[%c0_33, %c0_34] : memref<16x32xf32, #tpu.memory_space<vmem>>, vector<16x32xf32>
    %c0_35 = arith.constant 0 : index
    %c0_36 = arith.constant 0 : index
    %88 = vector.load %arg7[%c0_35, %c0_36] : memref<1x32xf32, #tpu.memory_space<vmem>>, vector<1x32xf32>
    %89 = vector.broadcast %88 : vector<1x32xf32> to vector<16x32xf32>
    %90 = arith.mulf %87, %89 : vector<16x32xf32>
    %cst_37 = arith.constant dense<0.000000e+00> : vector<16xf32>
    %91 = vector.multi_reduction <add>, %90, %cst_37 [1] : vector<16x32xf32> to vector<16xf32>
    %92 = vector.shape_cast %91 : vector<16xf32> to vector<16x1xf32>
    %c0_38 = arith.constant 0 : index
    %c0_39 = arith.constant 0 : index
    %93 = vector.load %arg8[%c0_38, %c0_39] : memref<1x1xf32, #tpu.memory_space<vmem>>, vector<1x1xf32>
    %94 = vector.broadcast %93 : vector<1x1xf32> to vector<16x1xf32>
    %95 = arith.addf %92, %94 : vector<16x1xf32>
    %c0_40 = arith.constant 0 : index
    %c0_41 = arith.constant 0 : index
    %96 = vector.load %arg9[%c0_40, %c0_41] : memref<16x1xf32, #tpu.memory_space<vmem>>, vector<16x1xf32>
    tpu.vector_store %arg9[%c0_40, %c0_41], %95 {strides = array<i32>} : memref<16x1xf32, #tpu.memory_space<vmem>>, vector<16x1xf32>,
    return
  }
}

</mosaic_0001>

<llo_original>
// kernel: rnn_series_forward.1
$region0: #{rnn_series_forward.1}
  #allocation0 [shape = 'u32[]', space=smem, size = 0x4, offset = 0x4, fixed_abs, tag = 'smem constant byte address 0x4 - core index']
  #allocation1 [shape = 'u32[144,128]{1,0:T(1,128)}', space=vmem, size = 0x12000, scoped, tag = 'internal scratch']
  #allocation2 [shape = 'f32[16,32]{1,0:T(8,128)}', space=vmem, size = 0x2000, scoped, tag = 'scratch operand']
  #allocation3 [shape = 'f32[1,1]{1,0:T(1,128)S(1)}', space=vmem, size = 0x200, scoped, tag = 'scoped memory for rnn_series_forward.1']
  %s0 = inlined_call_operand.vmem [shape: f32[2,8], index: 0, kind: input, shape index: {}]
  %s1 = inlined_call_operand.vmem [shape: f32[2,8], index: 1, kind: input, shape index: {}]
  %s2 = inlined_call_operand.vmem [shape: bf16[8,32], index: 2, kind: input, shape index: {}]
  %s3 = inlined_call_operand.vmem [shape: f32[1,32], index: 3, kind: input, shape index: {}]
  %s4 = inlined_call_operand.vmem [shape: bf16[32,32], index: 4, kind: input, shape index: {}]
  %s5 = inlined_call_operand.vmem [shape: bf16[32,32], index: 5, kind: input, shape index: {}]
  %s6 = inlined_call_operand.vmem [shape: f32[1,32], index: 6, kind: input, shape index: {}]
  %s7 = inlined_call_operand.vmem [shape: f32[1,32], index: 7, kind: input, shape index: {}]
  %s8 = inlined_call_operand.<no memory space> [shape: f32[1,1], index: 8, kind: input, shape index: {}]
  %s9 = inlined_call_operand.vmem [shape: f32[16,1], index: 9, kind: output, shape index: {}]
  %s10 = sld [smem:[#allocation0]]
  $region46: #{rnn_series_forward.1} parent=0
    _
  %s12 = ssub.s32 1, %s10
  %s13 = scalar_select 0, %s12, %s10
  %v14 = vstv %s8
  %15 = vst [vmem:[#allocation3] sm:$0x1] %v14
  // Predicated region
  $region2: #{rnn_series_forward.1} parent=0 // pred_check
    _
  $region3: #{rnn_series_forward.1} parent=0 // pred_check_branch
    %17 = sbr.rel (0) target = $region5
  $region4: #{rnn_series_forward.1} parent=0 // pred_region
    _
  $region5: #{rnn_series_forward.1} parent=0 // pred_fallthru
    _
  // Predicated region
  $region6: #{rnn_series_forward.1} parent=0 // pred_check
    _
  $region7: #{rnn_series_forward.1} parent=0 // pred_check_branch
    %19 = sbr.rel (0) target = $region9
  $region8: #{rnn_series_forward.1} parent=0 // pred_region
    _
  $region9: #{rnn_series_forward.1} parent=0 // pred_fallthru
    _
  // Predicated region
  $region10: #{rnn_series_forward.1} parent=0 // pred_check
    _
  $region11: #{rnn_series_forward.1} parent=0 // pred_check_branch
    %21 = sbr.rel (0) target = $region13
  $region12: #{rnn_series_forward.1} parent=0 // pred_region
    _
  $region13: #{rnn_series_forward.1} parent=0 // pred_fallthru
    _
  // Predicated region
  $region14: #{rnn_series_forward.1} parent=0 // pred_check
    _
  $region15: #{rnn_series_forward.1} parent=0 // pred_check_branch
    %23 = sbr.rel (0) target = $region17
  $region16: #{rnn_series_forward.1} parent=0 // pred_region
    _
  $region17: #{rnn_series_forward.1} parent=0 // pred_fallthru
    _
  // Predicated region
  $region18: #{rnn_series_forward.1} parent=0 // pred_check
    _
  $region19: #{rnn_series_forward.1} parent=0 // pred_check_branch
    %25 = sbr.rel (0) target = $region21
  $region20: #{rnn_series_forward.1} parent=0 // pred_region
    _
  $region21: #{rnn_series_forward.1} parent=0 // pred_fallthru
    _
  // Predicated region
  $region22: #{rnn_series_forward.1} parent=0 // pred_check
    _
  $region23: #{rnn_series_forward.1} parent=0 // pred_check_branch
    %27 = sbr.rel (0) target = $region25
  $region24: #{rnn_series_forward.1} parent=0 // pred_region
    _
  $region25: #{rnn_series_forward.1} parent=0 // pred_fallthru
    _
  // Predicated region
  $region26: #{rnn_series_forward.1} parent=0 // pred_check
    _
  $region27: #{rnn_series_forward.1} parent=0 // pred_check_branch
    %29 = sbr.rel (0) target = $region29
  $region28: #{rnn_series_forward.1} parent=0 // pred_region
    _
  $region29: #{rnn_series_forward.1} parent=0 // pred_fallthru
    _
  // Predicated region
  $region30: #{rnn_series_forward.1} parent=0 // pred_check
    _
  $region31: #{rnn_series_forward.1} parent=0 // pred_check_branch
    %31 = sbr.rel (0) target = $region33
  $region32: #{rnn_series_forward.1} parent=0 // pred_region
    _
  $region33: #{rnn_series_forward.1} parent=0 // pred_fallthru
    _
  // Predicated region
  $region34: #{rnn_series_forward.1} parent=0 // pred_check
    _
  $region35: #{rnn_series_forward.1} parent=0 // pred_check_branch
    %33 = sbr.rel (0) target = $region37
  $region36: #{rnn_series_forward.1} parent=0 // pred_region
    _
  $region37: #{rnn_series_forward.1} parent=0 // pred_fallthru
    _
  %v35 = vld [vmem:[%s0] sm:$0x3]
  %37 = vrot.lane.b32.xlu0 %v35, 3
  %v38 = vpop.permute.xlu0 %37
  %vm40 = vcmask 23552
  %v41 = vsel %vm40, 0.0, %v38
  %v42 = vld [vmem:[%s1] sm:$0x3]
  %44 = vrot.lane.b32.xlu0 %v42, 3
  %v45 = vpop.permute.xlu0 %44
  %v47 = vsel %vm40, 0.0, %v45
  %v49 = vrot.slane %v41, 6
  %50 = vrot.lane.b32.xlu0 %v49, 127
  %v51 = vpop.permute.xlu0 %50
  %v53 = vrot.slane %v41, 4
  %54 = vrot.lane.b32.xlu0 %v53, 126
  %v55 = vpop.permute.xlu0 %54
  %v57 = vrot.slane %v41, 2
  %58 = vrot.lane.b32.xlu0 %v57, 125
  %v59 = vpop.permute.xlu0 %58
  %61 = vrot.lane.b32.xlu0 %v41, 124
  %v62 = vpop.permute.xlu0 %61
  %64 = vrot.lane.b32.xlu0 %v49, 123
  %v65 = vpop.permute.xlu0 %64
  %67 = vrot.lane.b32.xlu0 %v53, 122
  %v68 = vpop.permute.xlu0 %67
  %70 = vrot.lane.b32.xlu0 %v57, 121
  %v71 = vpop.permute.xlu0 %70
  %vm73 = vcmask 1041408
  %v74 = vsel %vm73, %v41, %v51
  %vm75 = vcmask 1043456
  %v76 = vsel %vm75, %v74, %v55
  %vm77 = vcmask 1045504
  %v78 = vsel %vm77, %v76, %v59
  %v79 = vsel %vm73, %v62, %v65
  %v80 = vsel %vm75, %v79, %v68
  %v81 = vsel %vm77, %v80, %v71
  %v83 = vrot.slane %v47, 6
  %84 = vrot.lane.b32.xlu0 %v83, 127
  %v85 = vpop.permute.xlu0 %84
  %v87 = vrot.slane %v47, 4
  %88 = vrot.lane.b32.xlu0 %v87, 126
  %v89 = vpop.permute.xlu0 %88
  %v91 = vrot.slane %v47, 2
  %92 = vrot.lane.b32.xlu0 %v91, 125
  %v93 = vpop.permute.xlu0 %92
  %95 = vrot.lane.b32.xlu0 %v47, 124
  %v96 = vpop.permute.xlu0 %95
  %98 = vrot.lane.b32.xlu0 %v83, 123
  %v99 = vpop.permute.xlu0 %98
  %101 = vrot.lane.b32.xlu0 %v87, 122
  %v102 = vpop.permute.xlu0 %101
  %104 = vrot.lane.b32.xlu0 %v91, 121
  %v105 = vpop.permute.xlu0 %104
  %v107 = vsel %vm73, %v47, %v85
  %v108 = vsel %vm75, %v107, %v89
  %v109 = vsel %vm77, %v108, %v93
  %v110 = vsel %vm73, %v96, %v99
  %v111 = vsel %vm75, %v110, %v102
  %v112 = vsel %vm77, %v111, %v105
  %115 = vrot.lane.b32.xlu0 %v109, 4
  %v116 = vpop.permute.xlu0 %115
  %117 = vrot.lane.b32.xlu0 %v112, 4
  %v118 = vpop.permute.xlu0 %117
  %vm121 = vcmask 31744
  %v122 = vsel %vm121, %v78, %v116
  %v123 = vsel %vm121, %v81, %v118
  %v124 = vpack.c.bf16 %v123, %v122
  %v125 = vld [vmem:[%s2] sm:$0xf]
  %v126 = vld [vmem:[%s3] sm:$0x1]
  %v128 = vlaneseq
  %v129 = vshrl.u32 %v128, 7
  %v130 = vsub.s32 0, %v129
  %v131 = vrot.slane %v126, %v130
  %vm133 = vcmask 64512
  %v135 = vsel %vm133, %v124, 0
  %v138 = vsel %vm75, %v125, 0
  %140 = vmatprep.subr.bf16.mxu0 0
  %141 = vmatpush1.bf16.msra.mxu0 0
  %142 = vmatprep.subr.bf16.mxu0 0
  %143 = vmatpush1.bf16.msra.mxu0 0
  %144 = vmatprep.subr.bf16.mxu0 0
  %145 = vmatpush1.bf16.msra.mxu0 0
  %146 = vmatprep.subr.bf16.mxu0 0
  %147 = vmatpush1.bf16.msra.mxu0 0
  %148 = vmatprep.subr.bf16.mxu0 0
  %149 = vmatpush1.bf16.msra.mxu0 0
  %150 = vmatprep.subr.bf16.mxu0 0
  %151 = vmatpush1.bf16.msra.mxu0 0
  %152 = vmatprep.subr.bf16.mxu0 0
  %153 = vmatpush1.bf16.msra.mxu0 0
  %154 = vmatprep.subr.bf16.mxu0 0
  %155 = vmatpush1.bf16.msra.mxu0 %v138
  %156 = vmatprep.subr.bf16.mxu0 0
  %157 = vmatpush2.bf16.msra.mxu0 0
  %158 = vmatprep.subr.bf16.mxu0 0
  %159 = vmatpush2.bf16.msra.mxu0 0
  %160 = vmatprep.subr.bf16.mxu0 0
  %161 = vmatpush2.bf16.msra.mxu0 0
  %162 = vmatprep.subr.bf16.mxu0 0
  %163 = vmatpush2.bf16.msra.mxu0 0
  %164 = vmatprep.subr.bf16.mxu0 0
  %165 = vmatpush2.bf16.msra.mxu0 0
  %166 = vmatprep.subr.bf16.mxu0 0
  %167 = vmatpush2.bf16.msra.mxu0 0
  %168 = vmatprep.subr.bf16.mxu0 0
  %169 = vmatpush2.bf16.msra.mxu0 0
  %170 = vmatprep.subr.bf16.mxu0 0
  %171 = vmatpush2.bf16.msra.mxu0 0
  %172 = vmatprep.mubr.bf16.mxu0 0
  %173 = vmatmul.mubr.bf16.gmra.mxu0 %v135
  %v174 = vpop.f32.mrf.mxu0
  %v175 = vadd.f32 %v131, %v174
  %v176 = vpop.f32.mrf.mxu0
  %v177 = vpop.f32.mrf.mxu0
  %v178 = vadd.f32 %v131, %v177
  %v179 = vpop.f32.mrf.mxu0
  %180 = vdwg.mxu0
  %v181 = vtanh.pop %v175
  %v182 = vtanh.pop %v178
  %v183 = vpack.c.bf16 %v182, %v181
  %v184 = vld [vmem:[%s4] sm:$0xf]
  %v185 = vld [vmem:[%s4 + $0x4] sm:$0xf]
  %v186 = vld [vmem:[%s4 + $0x8] sm:$0xf]
  %v187 = vld [vmem:[%s4 + $0xc] sm:$0xf]
  %v188 = vld [vmem:[%s6] sm:$0x1]
  %v190 = vlaneseq
  %v191 = vshrl.u32 %v190, 7
  %v192 = vsub.s32 0, %v191
  %v193 = vrot.slane %v188, %v192
  %v199 = vunpack.c.l.b16 %v184
  %v200 = vunpack.c.l.b16 %v185
  %v201 = vunpack.c.l.b16 %v186
  %v202 = vunpack.c.l.b16 %v187
  %v203 = vpack.c.b16 %v200, %v199
  %v204 = vpack.c.b16 %v202, %v201
  %vm207 = vcmask 261120
  %v209 = vsel %vm207, %v183, 0
  %211 = vmatprep.subr.bf16.mxu0 0
  %212 = vmatpush1.bf16.msra.mxu0 0
  %213 = vmatprep.subr.bf16.mxu0 0
  %214 = vmatpush1.bf16.msra.mxu0 0
  %215 = vmatprep.subr.bf16.mxu0 0
  %216 = vmatpush1.bf16.msra.mxu0 0
  %217 = vmatprep.subr.bf16.mxu0 0
  %218 = vmatpush1.bf16.msra.mxu0 0
  %219 = vmatprep.subr.bf16.mxu0 0
  %220 = vmatpush1.bf16.msra.mxu0 0
  %221 = vmatprep.subr.bf16.mxu0 0
  %222 = vmatpush1.bf16.msra.mxu0 0
  %223 = vmatprep.subr.bf16.mxu0 0
  %224 = vmatpush1.bf16.msra.mxu0 %v204
  %225 = vmatprep.subr.bf16.mxu0 0
  %226 = vmatpush1.bf16.msra.mxu0 %v203
  %227 = vmatprep.subr.bf16.mxu0 0
  %228 = vmatpush2.bf16.msra.mxu0 0
  %229 = vmatprep.subr.bf16.mxu0 0
  %230 = vmatpush2.bf16.msra.mxu0 0
  %231 = vmatprep.subr.bf16.mxu0 0
  %232 = vmatpush2.bf16.msra.mxu0 0
  %233 = vmatprep.subr.bf16.mxu0 0
  %234 = vmatpush2.bf16.msra.mxu0 0
  %235 = vmatprep.subr.bf16.mxu0 0
  %236 = vmatpush2.bf16.msra.mxu0 0
  %237 = vmatprep.subr.bf16.mxu0 0
  %238 = vmatpush2.bf16.msra.mxu0 0
  %239 = vmatprep.subr.bf16.mxu0 0
  %240 = vmatpush2.bf16.msra.mxu0 0
  %241 = vmatprep.subr.bf16.mxu0 0
  %242 = vmatpush2.bf16.msra.mxu0 0
  %243 = vmatprep.mubr.bf16.mxu0 0
  %244 = vmatmul.mubr.bf16.gmra.mxu0 %v209
  %v245 = vpop.f32.mrf.mxu0
  %v246 = vadd.f32 %v193, %v245
  %v247 = vpop.f32.mrf.mxu0
  %v248 = vpop.f32.mrf.mxu0
  %v249 = vadd.f32 %v193, %v248
  %v250 = vpop.f32.mrf.mxu0
  %251 = vdwg.mxu0
  %v252 = vld [vmem:[%s5] sm:$0xf]
  %v253 = vld [vmem:[%s5 + $0x4] sm:$0xf]
  %v254 = vld [vmem:[%s5 + $0x8] sm:$0xf]
  %v255 = vld [vmem:[%s5 + $0xc] sm:$0xf]
  %v260 = vunpack.c.l.b16 %v252
  %v261 = vunpack.c.l.b16 %v253
  %v262 = vunpack.c.l.b16 %v254
  %v263 = vunpack.c.l.b16 %v255
  %v264 = vpack.c.b16 %v261, %v260
  %v265 = vpack.c.b16 %v263, %v262
  %v269 = vsel %vm207, 0, 0
  %271 = vmatprep.subr.bf16.mxu0 0
  %272 = vmatpush1.bf16.msra.mxu0 0
  %273 = vmatprep.subr.bf16.mxu0 0
  %274 = vmatpush1.bf16.msra.mxu0 0
  %275 = vmatprep.subr.bf16.mxu0 0
  %276 = vmatpush1.bf16.msra.mxu0 0
  %277 = vmatprep.subr.bf16.mxu0 0
  %278 = vmatpush1.bf16.msra.mxu0 0
  %279 = vmatprep.subr.bf16.mxu0 0
  %280 = vmatpush1.bf16.msra.mxu0 0
  %281 = vmatprep.subr.bf16.mxu0 0
  %282 = vmatpush1.bf16.msra.mxu0 0
  %283 = vmatprep.subr.bf16.mxu0 0
  %284 = vmatpush1.bf16.msra.mxu0 %v265
  %285 = vmatprep.subr.bf16.mxu0 0
  %286 = vmatpush1.bf16.msra.mxu0 %v264
  %287 = vmatprep.subr.bf16.mxu0 0
  %288 = vmatpush2.bf16.msra.mxu0 0
  %289 = vmatprep.subr.bf16.mxu0 0
  %290 = vmatpush2.bf16.msra.mxu0 0
  %291 = vmatprep.subr.bf16.mxu0 0
  %292 = vmatpush2.bf16.msra.mxu0 0
  %293 = vmatprep.subr.bf16.mxu0 0
  %294 = vmatpush2.bf16.msra.mxu0 0
  %295 = vmatprep.subr.bf16.mxu0 0
  %296 = vmatpush2.bf16.msra.mxu0 0
  %297 = vmatprep.subr.bf16.mxu0 0
  %298 = vmatpush2.bf16.msra.mxu0 0
  %299 = vmatprep.subr.bf16.mxu0 0
  %300 = vmatpush2.bf16.msra.mxu0 0
  %301 = vmatprep.subr.bf16.mxu0 0
  %302 = vmatpush2.bf16.msra.mxu0 0
  %303 = vmatprep.mubr.bf16.mxu0 0
  %304 = vmatmul.mubr.bf16.gmra.mxu0 %v269
  %v305 = vpop.f32.mrf.mxu0
  %v306 = vadd.f32 0.0, %v305
  %v307 = vpop.f32.mrf.mxu0
  %v308 = vpop.f32.mrf.mxu0
  %v309 = vpop.f32.mrf.mxu0
  %310 = vdwg.mxu0
  %v311 = vadd.f32 %v246, %v306
  %v312 = vtanh.pop %v311
  %vm313 = vcmask 254976
  %314 = vst.msk [vmem:[#allocation2] sm:$0x3] %vm313, %v312
  %v315 = vpack.c.bf16 %v312, %v312
  %v317 = vsel %vm207, %v315, 0
  %319 = vmatprep.subr.bf16.mxu0 0
  %320 = vmatpush1.bf16.msra.mxu0 0
  %321 = vmatprep.subr.bf16.mxu0 0
  %322 = vmatpush1.bf16.msra.mxu0 0
  %323 = vmatprep.subr.bf16.mxu0 0
  %324 = vmatpush1.bf16.msra.mxu0 0
  %325 = vmatprep.subr.bf16.mxu0 0
  %326 = vmatpush1.bf16.msra.mxu0 0
  %327 = vmatprep.subr.bf16.mxu0 0
  %328 = vmatpush1.bf16.msra.mxu0 0
  %329 = vmatprep.subr.bf16.mxu0 0
  %330 = vmatpush1.bf16.msra.mxu0 0
  %331 = vmatprep.subr.bf16.mxu0 0
  %332 = vmatpush1.bf16.msra.mxu0 %v265
  %333 = vmatprep.subr.bf16.mxu0 0
  %334 = vmatpush1.bf16.msra.mxu0 %v264
  %335 = vmatprep.subr.bf16.mxu0 0
  %336 = vmatpush2.bf16.msra.mxu0 0
  %337 = vmatprep.subr.bf16.mxu0 0
  %338 = vmatpush2.bf16.msra.mxu0 0
  %339 = vmatprep.subr.bf16.mxu0 0
  %340 = vmatpush2.bf16.msra.mxu0 0
  %341 = vmatprep.subr.bf16.mxu0 0
  %342 = vmatpush2.bf16.msra.mxu0 0
  %343 = vmatprep.subr.bf16.mxu0 0
  %344 = vmatpush2.bf16.msra.mxu0 0
  %345 = vmatprep.subr.bf16.mxu0 0
  %346 = vmatpush2.bf16.msra.mxu0 0
  %347 = vmatprep.subr.bf16.mxu0 0
  %348 = vmatpush2.bf16.msra.mxu0 0
  %349 = vmatprep.subr.bf16.mxu0 0
  %350 = vmatpush2.bf16.msra.mxu0 0
  %351 = vmatprep.mubr.bf16.mxu0 0
  %352 = vmatmul.mubr.bf16.gmra.mxu0 %v317
  %v353 = vpop.f32.mrf.mxu0
  %v354 = vadd.f32 0.0, %v353
  %v355 = vpop.f32.mrf.mxu0
  %v356 = vpop.f32.mrf.mxu0
  %v357 = vpop.f32.mrf.mxu0
  %358 = vdwg.mxu0
  %v360 = vrot.slane %v354, 6
  %v362 = vadd.f32 %v246, %v360
  %v363 = vtanh.pop %v362
  %vm364 = vcmask 257026
  %365 = vst.msk [vmem:[#allocation2] sm:$0xc] %vm364, %v363
  %v366 = vpack.c.bf16 %v363, %v363
  %v368 = vrot.slane %v366, 1
  %v370 = vsel %vm207, %v368, 0
  %372 = vmatprep.subr.bf16.mxu0 0
  %373 = vmatpush1.bf16.msra.mxu0 0
  %374 = vmatprep.subr.bf16.mxu0 0
  %375 = vmatpush1.bf16.msra.mxu0 0
  %376 = vmatprep.subr.bf16.mxu0 0
  %377 = vmatpush1.bf16.msra.mxu0 0
  %378 = vmatprep.subr.bf16.mxu0 0
  %379 = vmatpush1.bf16.msra.mxu0 0
  %380 = vmatprep.subr.bf16.mxu0 0
  %381 = vmatpush1.bf16.msra.mxu0 0
  %382 = vmatprep.subr.bf16.mxu0 0
  %383 = vmatpush1.bf16.msra.mxu0 0
  %384 = vmatprep.subr.bf16.mxu0 0
  %385 = vmatpush1.bf16.msra.mxu0 %v265
  %386 = vmatprep.subr.bf16.mxu0 0
  %387 = vmatpush1.bf16.msra.mxu0 %v264
  %388 = vmatprep.subr.bf16.mxu0 0
  %389 = vmatpush2.bf16.msra.mxu0 0
  %390 = vmatprep.subr.bf16.mxu0 0
  %391 = vmatpush2.bf16.msra.mxu0 0
  %392 = vmatprep.subr.bf16.mxu0 0
  %393 = vmatpush2.bf16.msra.mxu0 0
  %394 = vmatprep.subr.bf16.mxu0 0
  %395 = vmatpush2.bf16.msra.mxu0 0
  %396 = vmatprep.subr.bf16.mxu0 0
  %397 = vmatpush2.bf16.msra.mxu0 0
  %398 = vmatprep.subr.bf16.mxu0 0
  %399 = vmatpush2.bf16.msra.mxu0 0
  %400 = vmatprep.subr.bf16.mxu0 0
  %401 = vmatpush2.bf16.msra.mxu0 0
  %402 = vmatprep.subr.bf16.mxu0 0
  %403 = vmatpush2.bf16.msra.mxu0 0
  %404 = vmatprep.mubr.bf16.mxu0 0
  %405 = vmatmul.mubr.bf16.gmra.mxu0 %v370
  %v406 = vpop.f32.mrf.mxu0
  %v407 = vadd.f32 0.0, %v406
  %v408 = vpop.f32.mrf.mxu0
  %v409 = vpop.f32.mrf.mxu0
  %v410 = vpop.f32.mrf.mxu0
  %411 = vdwg.mxu0
  %v413 = vrot.slane %v407, 4
  %v415 = vadd.f32 %v246, %v413
  %v416 = vtanh.pop %v415
  %vm417 = vcmask 259076
  %418 = vst.msk [vmem:[#allocation2] sm:$0x30] %vm417, %v416
  %v419 = vpack.c.bf16 %v416, %v416
  %v421 = vrot.slane %v419, 2
  %v423 = vsel %vm207, %v421, 0
  %425 = vmatprep.subr.bf16.mxu0 0
  %426 = vmatpush1.bf16.msra.mxu0 0
  %427 = vmatprep.subr.bf16.mxu0 0
  %428 = vmatpush1.bf16.msra.mxu0 0
  %429 = vmatprep.subr.bf16.mxu0 0
  %430 = vmatpush1.bf16.msra.mxu0 0
  %431 = vmatprep.subr.bf16.mxu0 0
  %432 = vmatpush1.bf16.msra.mxu0 0
  %433 = vmatprep.subr.bf16.mxu0 0
  %434 = vmatpush1.bf16.msra.mxu0 0
  %435 = vmatprep.subr.bf16.mxu0 0
  %436 = vmatpush1.bf16.msra.mxu0 0
  %437 = vmatprep.subr.bf16.mxu0 0
  %438 = vmatpush1.bf16.msra.mxu0 %v265
  %439 = vmatprep.subr.bf16.mxu0 0
  %440 = vmatpush1.bf16.msra.mxu0 %v264
  %441 = vmatprep.subr.bf16.mxu0 0
  %442 = vmatpush2.bf16.msra.mxu0 0
  %443 = vmatprep.subr.bf16.mxu0 0
  %444 = vmatpush2.bf16.msra.mxu0 0
  %445 = vmatprep.subr.bf16.mxu0 0
  %446 = vmatpush2.bf16.msra.mxu0 0
  %447 = vmatprep.subr.bf16.mxu0 0
  %448 = vmatpush2.bf16.msra.mxu0 0
  %449 = vmatprep.subr.bf16.mxu0 0
  %450 = vmatpush2.bf16.msra.mxu0 0
  %451 = vmatprep.subr.bf16.mxu0 0
  %452 = vmatpush2.bf16.msra.mxu0 0
  %453 = vmatprep.subr.bf16.mxu0 0
  %454 = vmatpush2.bf16.msra.mxu0 0
  %455 = vmatprep.subr.bf16.mxu0 0
  %456 = vmatpush2.bf16.msra.mxu0 0
  %457 = vmatprep.mubr.bf16.mxu0 0
  %458 = vmatmul.mubr.bf16.gmra.mxu0 %v423
  %v459 = vpop.f32.mrf.mxu0
  %v460 = vadd.f32 0.0, %v459
  %v461 = vpop.f32.mrf.mxu0
  %v462 = vpop.f32.mrf.mxu0
  %v463 = vpop.f32.mrf.mxu0
  %464 = vdwg.mxu0
  %v466 = vrot.slane %v460, 2
  %v468 = vadd.f32 %v246, %v466
  %v469 = vtanh.pop %v468
  %vm470 = vcmask 261126
  %471 = vst.msk [vmem:[#allocation2] sm:$0xc0] %vm470, %v469
  %v472 = vpack.c.bf16 %v469, %v469
  %v474 = vrot.slane %v472, 3
  %v476 = vsel %vm207, %v474, 0
  %478 = vmatprep.subr.bf16.mxu0 0
  %479 = vmatpush1.bf16.msra.mxu0 0
  %480 = vmatprep.subr.bf16.mxu0 0
  %481 = vmatpush1.bf16.msra.mxu0 0
  %482 = vmatprep.subr.bf16.mxu0 0
  %483 = vmatpush1.bf16.msra.mxu0 0
  %484 = vmatprep.subr.bf16.mxu0 0
  %485 = vmatpush1.bf16.msra.mxu0 0
  %486 = vmatprep.subr.bf16.mxu0 0
  %487 = vmatpush1.bf16.msra.mxu0 0
  %488 = vmatprep.subr.bf16.mxu0 0
  %489 = vmatpush1.bf16.msra.mxu0 0
  %490 = vmatprep.subr.bf16.mxu0 0
  %491 = vmatpush1.bf16.msra.mxu0 %v265
  %492 = vmatprep.subr.bf16.mxu0 0
  %493 = vmatpush1.bf16.msra.mxu0 %v264
  %494 = vmatprep.subr.bf16.mxu0 0
  %495 = vmatpush2.bf16.msra.mxu0 0
  %496 = vmatprep.subr.bf16.mxu0 0
  %497 = vmatpush2.bf16.msra.mxu0 0
  %498 = vmatprep.subr.bf16.mxu0 0
  %499 = vmatpush2.bf16.msra.mxu0 0
  %500 = vmatprep.subr.bf16.mxu0 0
  %501 = vmatpush2.bf16.msra.mxu0 0
  %502 = vmatprep.subr.bf16.mxu0 0
  %503 = vmatpush2.bf16.msra.mxu0 0
  %504 = vmatprep.subr.bf16.mxu0 0
  %505 = vmatpush2.bf16.msra.mxu0 0
  %506 = vmatprep.subr.bf16.mxu0 0
  %507 = vmatpush2.bf16.msra.mxu0 0
  %508 = vmatprep.subr.bf16.mxu0 0
  %509 = vmatpush2.bf16.msra.mxu0 0
  %510 = vmatprep.mubr.bf16.mxu0 0
  %511 = vmatmul.mubr.bf16.gmra.mxu0 %v476
  %v512 = vpop.f32.mrf.mxu0
  %v513 = vadd.f32 0.0, %v512
  %v514 = vpop.f32.mrf.mxu0
  %v515 = vpop.f32.mrf.mxu0
  %v516 = vpop.f32.mrf.mxu0
  %517 = vdwg.mxu0
  %v518 = vadd.f32 %v249, %v513
  %v519 = vtanh.pop %v518
  %520 = vst.msk [vmem:[#allocation2 + $0x8] sm:$0x3] %vm313, %v519
  %v521 = vpack.c.bf16 %v519, %v519
  %v523 = vsel %vm207, %v521, 0
  %525 = vmatprep.subr.bf16.mxu0 0
  %526 = vmatpush1.bf16.msra.mxu0 0
  %527 = vmatprep.subr.bf16.mxu0 0
  %528 = vmatpush1.bf16.msra.mxu0 0
  %529 = vmatprep.subr.bf16.mxu0 0
  %530 = vmatpush1.bf16.msra.mxu0 0
  %531 = vmatprep.subr.bf16.mxu0 0
  %532 = vmatpush1.bf16.msra.mxu0 0
  %533 = vmatprep.subr.bf16.mxu0 0
  %534 = vmatpush1.bf16.msra.mxu0 0
  %535 = vmatprep.subr.bf16.mxu0 0
  %536 = vmatpush1.bf16.msra.mxu0 0
  %537 = vmatprep.subr.bf16.mxu0 0
  %538 = vmatpush1.bf16.msra.mxu0 %v265
  %539 = vmatprep.subr.bf16.mxu0 0
  %540 = vmatpush1.bf16.msra.mxu0 %v264
  %541 = vmatprep.subr.bf16.mxu0 0
  %542 = vmatpush2.bf16.msra.mxu0 0
  %543 = vmatprep.subr.bf16.mxu0 0
  %544 = vmatpush2.bf16.msra.mxu0 0
  %545 = vmatprep.subr.bf16.mxu0 0
  %546 = vmatpush2.bf16.msra.mxu0 0
  %547 = vmatprep.subr.bf16.mxu0 0
  %548 = vmatpush2.bf16.msra.mxu0 0
  %549 = vmatprep.subr.bf16.mxu0 0
  %550 = vmatpush2.bf16.msra.mxu0 0
  %551 = vmatprep.subr.bf16.mxu0 0
  %552 = vmatpush2.bf16.msra.mxu0 0
  %553 = vmatprep.subr.bf16.mxu0 0
  %554 = vmatpush2.bf16.msra.mxu0 0
  %555 = vmatprep.subr.bf16.mxu0 0
  %556 = vmatpush2.bf16.msra.mxu0 0
  %557 = vmatprep.mubr.bf16.mxu0 0
  %558 = vmatmul.mubr.bf16.gmra.mxu0 %v523
  %v559 = vpop.f32.mrf.mxu0
  %v560 = vadd.f32 0.0, %v559
  %v561 = vpop.f32.mrf.mxu0
  %v562 = vpop.f32.mrf.mxu0
  %v563 = vpop.f32.mrf.mxu0
  %564 = vdwg.mxu0
  %v566 = vrot.slane %v560, 6
  %v568 = vadd.f32 %v249, %v566
  %v569 = vtanh.pop %v568
  %570 = vst.msk [vmem:[#allocation2 + $0x8] sm:$0xc] %vm364, %v569
  %v571 = vpack.c.bf16 %v569, %v569
  %v573 = vrot.slane %v571, 1
  %v575 = vsel %vm207, %v573, 0
  %577 = vmatprep.subr.bf16.mxu0 0
  %578 = vmatpush1.bf16.msra.mxu0 0
  %579 = vmatprep.subr.bf16.mxu0 0
  %580 = vmatpush1.bf16.msra.mxu0 0
  %581 = vmatprep.subr.bf16.mxu0 0
  %582 = vmatpush1.bf16.msra.mxu0 0
  %583 = vmatprep.subr.bf16.mxu0 0
  %584 = vmatpush1.bf16.msra.mxu0 0
  %585 = vmatprep.subr.bf16.mxu0 0
  %586 = vmatpush1.bf16.msra.mxu0 0
  %587 = vmatprep.subr.bf16.mxu0 0
  %588 = vmatpush1.bf16.msra.mxu0 0
  %589 = vmatprep.subr.bf16.mxu0 0
  %590 = vmatpush1.bf16.msra.mxu0 %v265
  %591 = vmatprep.subr.bf16.mxu0 0
  %592 = vmatpush1.bf16.msra.mxu0 %v264
  %593 = vmatprep.subr.bf16.mxu0 0
  %594 = vmatpush2.bf16.msra.mxu0 0
  %595 = vmatprep.subr.bf16.mxu0 0
  %596 = vmatpush2.bf16.msra.mxu0 0
  %597 = vmatprep.subr.bf16.mxu0 0
  %598 = vmatpush2.bf16.msra.mxu0 0
  %599 = vmatprep.subr.bf16.mxu0 0
  %600 = vmatpush2.bf16.msra.mxu0 0
  %601 = vmatprep.subr.bf16.mxu0 0
  %602 = vmatpush2.bf16.msra.mxu0 0
  %603 = vmatprep.subr.bf16.mxu0 0
  %604 = vmatpush2.bf16.msra.mxu0 0
  %605 = vmatprep.subr.bf16.mxu0 0
  %606 = vmatpush2.bf16.msra.mxu0 0
  %607 = vmatprep.subr.bf16.mxu0 0
  %608 = vmatpush2.bf16.msra.mxu0 0
  %609 = vmatprep.mubr.bf16.mxu0 0
  %610 = vmatmul.mubr.bf16.gmra.mxu0 %v575
  %v611 = vpop.f32.mrf.mxu0
  %v612 = vadd.f32 0.0, %v611
  %v613 = vpop.f32.mrf.mxu0
  %v614 = vpop.f32.mrf.mxu0
  %v615 = vpop.f32.mrf.mxu0
  %616 = vdwg.mxu0
  %v618 = vrot.slane %v612, 4
  %v620 = vadd.f32 %v249, %v618
  %v621 = vtanh.pop %v620
  %622 = vst.msk [vmem:[#allocation2 + $0x8] sm:$0x30] %vm417, %v621
  %v623 = vpack.c.bf16 %v621, %v621
  %v625 = vrot.slane %v623, 2
  %v627 = vsel %vm207, %v625, 0
  %629 = vmatprep.subr.bf16.mxu0 0
  %630 = vmatpush1.bf16.msra.mxu0 0
  %631 = vmatprep.subr.bf16.mxu0 0
  %632 = vmatpush1.bf16.msra.mxu0 0
  %633 = vmatprep.subr.bf16.mxu0 0
  %634 = vmatpush1.bf16.msra.mxu0 0
  %635 = vmatprep.subr.bf16.mxu0 0
  %636 = vmatpush1.bf16.msra.mxu0 0
  %637 = vmatprep.subr.bf16.mxu0 0
  %638 = vmatpush1.bf16.msra.mxu0 0
  %639 = vmatprep.subr.bf16.mxu0 0
  %640 = vmatpush1.bf16.msra.mxu0 0
  %641 = vmatprep.subr.bf16.mxu0 0
  %642 = vmatpush1.bf16.msra.mxu0 %v265
  %643 = vmatprep.subr.bf16.mxu0 0
  %644 = vmatpush1.bf16.msra.mxu0 %v264
  %645 = vmatprep.subr.bf16.mxu0 0
  %646 = vmatpush2.bf16.msra.mxu0 0
  %647 = vmatprep.subr.bf16.mxu0 0
  %648 = vmatpush2.bf16.msra.mxu0 0
  %649 = vmatprep.subr.bf16.mxu0 0
  %650 = vmatpush2.bf16.msra.mxu0 0
  %651 = vmatprep.subr.bf16.mxu0 0
  %652 = vmatpush2.bf16.msra.mxu0 0
  %653 = vmatprep.subr.bf16.mxu0 0
  %654 = vmatpush2.bf16.msra.mxu0 0
  %655 = vmatprep.subr.bf16.mxu0 0
  %656 = vmatpush2.bf16.msra.mxu0 0
  %657 = vmatprep.subr.bf16.mxu0 0
  %658 = vmatpush2.bf16.msra.mxu0 0
  %659 = vmatprep.subr.bf16.mxu0 0
  %660 = vmatpush2.bf16.msra.mxu0 0
  %661 = vmatprep.mubr.bf16.mxu0 0
  %662 = vmatmul.mubr.bf16.gmra.mxu0 %v627
  %v663 = vpop.f32.mrf.mxu0
  %v664 = vadd.f32 0.0, %v663
  %v665 = vpop.f32.mrf.mxu0
  %v666 = vpop.f32.mrf.mxu0
  %v667 = vpop.f32.mrf.mxu0
  %668 = vdwg.mxu0
  %v670 = vrot.slane %v664, 2
  %v672 = vadd.f32 %v249, %v670
  %v673 = vtanh.pop %v672
  %674 = vst.msk [vmem:[#allocation2 + $0x8] sm:$0xc0] %vm470, %v673
  %v675 = vld [vmem:[#allocation2] sm:$0xff]
  %v676 = vld [vmem:[#allocation2 + $0x8] sm:$0xff]
  %v677 = vld [vmem:[%s7] sm:$0x1]
  %v679 = vlaneseq
  %v680 = vshrl.u32 %v679, 7
  %v681 = vsub.s32 0, %v680
  %v682 = vrot.slane %v677, %v681
  %v684 = vmul.f32 %v675, %v682
  %v685 = vmul.f32 %v676, %v682
  %v686 = vsel %vm207, %v684, 0.0
  %687 = vadd.xlane.f32.xlu0 %v686
  %v688 = vpop.xlane.xlu0 %687
  %v689 = vsel %vm207, %v685, 0.0
  %690 = vadd.xlane.f32.xlu0 %v689
  %v691 = vpop.xlane.xlu0 %690
  %v692 = vld [vmem:[#allocation3] sm:$0x1]
  %v694 = vlaneseq
  %v695 = vshrl.u32 %v694, 7
  %v696 = vsub.s32 0, %v695
  %v697 = vrot.slane %v692, %v696
  %v699 = vadd.f32 %v688, %v697
  %v700 = vadd.f32 %v691, %v697
  %vm701 = vcmask 7168
  %702 = vst.msk [vmem:[%s9] sm:$0xff] %vm701, %v699
  %703 = vst.msk [vmem:[%s9 + $0x8] sm:$0xff] %vm701, %v700
  // Predicated region
  $region38: #{rnn_series_forward.1} parent=0 // pred_check
    _
  $region39: #{rnn_series_forward.1} parent=0 // pred_check_branch
    %705 = sbr.rel (0) target = $region41
  $region40: #{rnn_series_forward.1} parent=0 // pred_region
    _
  $region41: #{rnn_series_forward.1} parent=0 // pred_fallthru
    _
  // Predicated region
  $region42: #{rnn_series_forward.1} parent=0 // pred_check
    _
  $region43: #{rnn_series_forward.1} parent=0 // pred_check_branch
    %707 = sbr.rel (0) target = $region45
  $region44: #{rnn_series_forward.1} parent=0 // pred_region
    _
  $region45: #{rnn_series_forward.1} parent=0 // pred_fallthru
    _

</llo_original>
